<compile_context>
chip_gen: v5e
topology: v5e:2x2
jax: 0.10.0
libtpu: 0.0.40
codegen_flags: <defaults>
</compile_context>

<pallas_src>
import functools

import jax
import jax.numpy as jnp
from jax.experimental import pallas as pl
from jax.experimental.pallas import tpu as pltpu


def _round_up(n: int, m: int) -> int:
    return ((n + m - 1) // m) * m


def _mlp_kernel(xT_ref, w1_ref, b1_ref, w2_ref, b2_ref, w3_ref, b3_ref, o_ref):
    # Per grid step (Bt = batch tile, on the lane axis):
    #   xT_ref : (nf, Bt)    w1 : (H, nf)   b1 : (H, 1)
    #   w2     : (H, H)      b2 : (H, 1)
    #   w3     : (H, 1)      b3 : (1,)  scalar in SMEM
    #   o_ref  : (1, Bt)     lane-dense output
    x = xT_ref[...].astype(jnp.float32)                 # matches PyTorch's x.float()

    # Layer 1: (H, nf) @ (nf, Bt) -> (H, Bt).  K=4; MXU is otherwise idle here.
    h1 = jnp.dot(w1_ref[...], x, preferred_element_type=jnp.float32) + b1_ref[...]
    h1 = jax.nn.sigmoid(h1)                             # EUP

    # Layer 2: (H, H) @ (H, Bt) -> (H, Bt).
    h2 = jnp.dot(w2_ref[...], h1, preferred_element_type=jnp.float32) + b2_ref[...]
    h2 = jax.nn.sigmoid(h2)

    # Layer 3 (out_features = 1): VPU multiply + sublane reduce instead of an M=1 MXU pass.
    out = jnp.sum(w3_ref[...] * h2, axis=0, keepdims=True) + b3_ref[0]   # (1, Bt)
    o_ref[...] = out.astype(o_ref.dtype)


@functools.partial(jax.jit, static_argnames=("batch_tile",))
def ann_regressor_forward(x, params, *, batch_tile=2048):
    """Forward pass of ANNRegressor via one fused Pallas kernel.

    x: (B, nfeatures) float array. Returns (B, 1) float32 predictions.
    params: w1 (H, nf), b1 (H, 1), w2 (H, H), b2 (H, 1), w3 (H, 1), b3 (1,).
    """
    B, nf = x.shape
    H = params["w1"].shape[0]

    # Lane-aligned batch tile; small batches collapse to a single grid step.
    tile = min(batch_tile, _round_up(B, 128))
    num_tiles = pl.cdiv(B, tile)
    B_pad = num_tiles * tile

    # Wrapper-side layout plumbing: put batch on the lane (last) axis, zero-pad to tile.
    xT = jnp.pad(x.astype(jnp.float32).T, ((0, 0), (0, B_pad - B)))

    # Advisory cost hint for XLA's scheduler around the custom call.
    weight_bytes = 4 * (H * nf + H + H * H + H + H + 1)
    cost = pl.CostEstimate(
        flops=2 * B_pad * (nf * H + H * H + H),
        transcendentals=2 * B_pad * H,                   # two sigmoid layers
        bytes_accessed=4 * (nf * B_pad + B_pad) + weight_bytes,
    )

    const = lambda i: (0, 0)   # weights/biases: same block every step -> stay resident
    out = pl.pallas_call(
        _mlp_kernel,
        out_shape=jax.ShapeDtypeStruct((1, B_pad), jnp.float32),
        grid=(num_tiles,),
        in_specs=[
            pl.BlockSpec((nf, tile), lambda i: (0, i)),          # x^T tile (lane-packed)
            pl.BlockSpec((H, nf), const),                        # w1
            pl.BlockSpec((H, 1), const),                         # b1
            pl.BlockSpec((H, H), const),                         # w2
            pl.BlockSpec((H, 1), const),                         # b2
            pl.BlockSpec((H, 1), const),                         # w3
            pl.BlockSpec(memory_space=pltpu.MemorySpace.SMEM),   # b3 scalar
        ],
        out_specs=pl.BlockSpec((1, tile), lambda i: (0, i)),     # lane-dense output
        compiler_params=pltpu.CompilerParams(
            dimension_semantics=("parallel",),                   # shards grid across TCs on v7x
        ),
        cost_estimate=cost,
    )(xT, params["w1"], params["b1"], params["w2"], params["b2"],
      params["w3"], params["b3"])

    return out[0, :B][:, None]                                   # (B, 1), padding dropped


def init_params(key, nfeatures=4, neurons=32):
    """Deterministic init mimicking PyTorch nn.Linear: U(-1/sqrt(fan_in), 1/sqrt(fan_in))."""
    ks = jax.random.split(key, 6)

    def lin(kw, kb, fan_in, fan_out):
        bound = 1.0 / jnp.sqrt(float(fan_in))
        w = jax.random.uniform(kw, (fan_out, fan_in), jnp.float32, -bound, bound)
        b = jax.random.uniform(kb, (fan_out,), jnp.float32, -bound, bound)
        return w, b

    w1, b1 = lin(ks[0], ks[1], nfeatures, neurons)
    w2, b2 = lin(ks[2], ks[3], neurons, neurons)
    w3, b3 = lin(ks[4], ks[5], neurons, 1)
    return {
        "w1": w1, "b1": b1[:, None],          # (H, nf), (H, 1)
        "w2": w2, "b2": b2[:, None],          # (H, H),  (H, 1)
        "w3": w3.T, "b3": b3,                 # (H, 1),  (1,)
    }


def _reference_forward(x, p):
    xf = x.astype(jnp.float32)
    h1 = jax.nn.sigmoid(xf @ p["w1"].T + p["b1"][:, 0])
    h2 = jax.nn.sigmoid(h1 @ p["w2"].T + p["b2"][:, 0])
    return h2 @ p["w3"] + p["b3"]


if __name__ == "__main__":
    key = jax.random.PRNGKey(0)
    k_param, k_x1, k_x2 = jax.random.split(key, 3)

    NFEATURES, NEURONS = 4, 32
    params = init_params(k_param, nfeatures=NFEATURES, neurons=NEURONS)

    # 1) Small batch (single padded grid step).
    B1 = 16
    x1 = jax.random.normal(k_x1, (B1, NFEATURES), dtype=jnp.float32)
    pred1 = jax.block_until_ready(ann_regressor_forward(x1, params))
    ref1 = _reference_forward(x1, params)
    assert pred1.shape == (B1, 1)
    assert jnp.allclose(pred1, ref1, atol=1e-4, rtol=1e-4), "mismatch (small batch)"

    # 2) Larger, non-tile-multiple batch (exercises the multi-step padded grid path).
    B2 = 300
    x2 = jax.random.normal(k_x2, (B2, NFEATURES), dtype=jnp.float32)
    pred2 = jax.block_until_ready(ann_regressor_forward(x2, params, batch_tile=128))
    ref2 = _reference_forward(x2, params)
    assert pred2.shape == (B2, 1)
    assert jnp.allclose(pred2, ref2, atol=1e-4, rtol=1e-4), "mismatch (multi-tile batch)"

    print("KERNEL_OK")
</pallas_src>

<mosaic_0001>
module attributes {stable_mosaic.version = 11 : i64} {
  func.func @_mlp_kernel(%arg0: i32, %arg1: memref<4x128xf32, #tpu.memory_space<vmem>>, %arg2: memref<32x4xf32, #tpu.memory_space<vmem>>, %arg3: memref<32x1xf32, #tpu.memory_space<vmem>>, %arg4: memref<32x32xf32, #tpu.memory_space<vmem>>, %arg5: memref<32x1xf32, #tpu.memory_space<vmem>>, %arg6: memref<32x1xf32, #tpu.memory_space<vmem>>, %arg7: memref<1xf32, #tpu.memory_space<smem>>, %arg8: memref<1x128xf32, #tpu.memory_space<vmem>>) attributes {dimension_semantics = [#tpu.dimension_semantics<parallel>], iteration_bounds = array<i64: 1>, scalar_prefetch = 0 : i64, scratch_operands = 0 : i64, tpu.core_type = #tpu.core_type<tc>, window_params = [{transform_indices = @transform_0, window_bounds = array<i64: 4, 128>}, {pipeline_mode = #tpu.pipeline_mode<synchronous>, transform_indices = @transform_1, window_bounds = array<i64: 32, 4>}, {pipeline_mode = #tpu.pipeline_mode<synchronous>, transform_indices = @transform_2, window_bounds = array<i64: 32, 1>}, {pipeline_mode = #tpu.pipeline_mode<synchronous>, transform_indices = @transform_3, window_bounds = array<i64: 32, 32>}, {pipeline_mode = #tpu.pipeline_mode<synchronous>, transform_indices = @transform_4, window_bounds = array<i64: 32, 1>}, {pipeline_mode = #tpu.pipeline_mode<synchronous>, transform_indices = @transform_5, window_bounds = array<i64: 32, 1>}, {transform_indices = @transform_6, window_bounds = array<i64: 1>}, {transform_indices = @transform_7, window_bounds = array<i64: 1, 128>}]} {
    %c0 = arith.constant 0 : index
    %c0_0 = arith.constant 0 : index
    %0 = vector.load %arg1[%c0, %c0_0] : memref<4x128xf32, #tpu.memory_space<vmem>>, vector<4x128xf32>
    %c0_1 = arith.constant 0 : index
    %c0_2 = arith.constant 0 : index
    %1 = vector.load %arg2[%c0_1, %c0_2] : memref<32x4xf32, #tpu.memory_space<vmem>>, vector<32x4xf32>
    %cst = arith.constant dense<0.000000e+00> : vector<32x128xf32>
    %2 = tpu.matmul %1, %0, %cst {dimension_numbers = #tpu.dot_dimension_numbers<[1], [0], [0], [1], [0, 0, 1, 1], [], []>} : vector<32x4xf32>, vector<4x128xf32>, vector<32x128xf32> -> vector<32x128xf32>
    %c0_3 = arith.constant 0 : index
    %c0_4 = arith.constant 0 : index
    %3 = vector.load %arg3[%c0_3, %c0_4] : memref<32x1xf32, #tpu.memory_space<vmem>>, vector<32x1xf32>
    %4 = vector.broadcast %3 : vector<32x1xf32> to vector<32x128xf32>
    %5 = arith.addf %2, %4 : vector<32x128xf32>
    %6 = arith.negf %5 : vector<32x128xf32>
    %7 = math.exp %6 : vector<32x128xf32>
    %cst_5 = arith.constant 1.000000e+00 : f32
    %8 = vector.broadcast %cst_5 : f32 to vector<32x128xf32>
    %9 = arith.addf %8, %7 : vector<32x128xf32>
    %10 = arith.divf %8, %9 : vector<32x128xf32>
    %c0_6 = arith.constant 0 : index
    %c0_7 = arith.constant 0 : index
    %11 = vector.load %arg4[%c0_6, %c0_7] : memref<32x32xf32, #tpu.memory_space<vmem>>, vector<32x32xf32>
    %cst_8 = arith.constant dense<0.000000e+00> : vector<32x128xf32>
    %12 = tpu.matmul %11, %10, %cst_8 {dimension_numbers = #tpu.dot_dimension_numbers<[1], [0], [0], [1], [0, 0, 1, 1], [], []>} : vector<32x32xf32>, vector<32x128xf32>, vector<32x128xf32> -> vector<32x128xf32>
    %c0_9 = arith.constant 0 : index
    %c0_10 = arith.constant 0 : index
    %13 = vector.load %arg5[%c0_9, %c0_10] : memref<32x1xf32, #tpu.memory_space<vmem>>, vector<32x1xf32>
    %14 = vector.broadcast %13 : vector<32x1xf32> to vector<32x128xf32>
    %15 = arith.addf %12, %14 : vector<32x128xf32>
    %16 = arith.negf %15 : vector<32x128xf32>
    %17 = math.exp %16 : vector<32x128xf32>
    %cst_11 = arith.constant 1.000000e+00 : f32
    %18 = vector.broadcast %cst_11 : f32 to vector<32x128xf32>
    %19 = arith.addf %18, %17 : vector<32x128xf32>
    %20 = arith.divf %18, %19 : vector<32x128xf32>
    %c0_12 = arith.constant 0 : index
    %c0_13 = arith.constant 0 : index
    %21 = vector.load %arg6[%c0_12, %c0_13] : memref<32x1xf32, #tpu.memory_space<vmem>>, vector<32x1xf32>
    %22 = vector.broadcast %21 : vector<32x1xf32> to vector<32x128xf32>
    %23 = arith.mulf %22, %20 : vector<32x128xf32>
    %cst_14 = arith.constant dense<0.000000e+00> : vector<128xf32>
    %24 = vector.multi_reduction <add>, %23, %cst_14 [0] : vector<32x128xf32> to vector<128xf32>
    %25 = vector.shape_cast %24 : vector<128xf32> to vector<1x128xf32>
    %c0_15 = arith.constant 0 : index
    %26 = memref.load %arg7[%c0_15] : memref<1xf32, #tpu.memory_space<smem>>
    %27 = vector.broadcast %26 : f32 to vector<1x128xf32>
    %28 = arith.addf %25, %27 : vector<1x128xf32>
    %c0_16 = arith.constant 0 : index
    %c0_17 = arith.constant 0 : index
    %29 = vector.load %arg8[%c0_16, %c0_17] : memref<1x128xf32, #tpu.memory_space<vmem>>, vector<1x128xf32>
    tpu.vector_store %arg8[%c0_16, %c0_17], %28 {strides = array<i32>} : memref<1x128xf32, #tpu.memory_space<vmem>>, vector<1x128xf32>,
    return
  }
  func.func @transform_0(%arg0: i32) -> (i32, i32) {
    %c0_i32 = arith.constant 0 : i32
    %c0_i32_0 = arith.constant 0 : i32
    return %c0_i32, %arg0 : i32, i32
  }
  func.func @transform_1(%arg0: i32) -> (i32, i32) {
    %c0_i32 = arith.constant 0 : i32
    %c0_i32_0 = arith.constant 0 : i32
    %c0_i32_1 = arith.constant 0 : i32
    return %c0_i32, %c0_i32_0 : i32, i32
  }
  func.func @transform_2(%arg0: i32) -> (i32, i32) {
    %c0_i32 = arith.constant 0 : i32
    %c0_i32_0 = arith.constant 0 : i32
    %c0_i32_1 = arith.constant 0 : i32
    return %c0_i32, %c0_i32_0 : i32, i32
  }
  func.func @transform_3(%arg0: i32) -> (i32, i32) {
    %c0_i32 = arith.constant 0 : i32
    %c0_i32_0 = arith.constant 0 : i32
    %c0_i32_1 = arith.constant 0 : i32
    return %c0_i32, %c0_i32_0 : i32, i32
  }
  func.func @transform_4(%arg0: i32) -> (i32, i32) {
    %c0_i32 = arith.constant 0 : i32
    %c0_i32_0 = arith.constant 0 : i32
    %c0_i32_1 = arith.constant 0 : i32
    return %c0_i32, %c0_i32_0 : i32, i32
  }
  func.func @transform_5(%arg0: i32) -> (i32, i32) {
    %c0_i32 = arith.constant 0 : i32
    %c0_i32_0 = arith.constant 0 : i32
    %c0_i32_1 = arith.constant 0 : i32
    return %c0_i32, %c0_i32_0 : i32, i32
  }
  func.func @transform_6(%arg0: i32) -> i32 {
    %c0_i32 = arith.constant 0 : i32
    %c0_i32_0 = arith.constant 0 : i32
    return %c0_i32 : i32
  }
  func.func @transform_7(%arg0: i32) -> (i32, i32) {
    %c0_i32 = arith.constant 0 : i32
    %c0_i32_0 = arith.constant 0 : i32
    return %c0_i32, %arg0 : i32, i32
  }
}

</mosaic_0001>

<llo_original>
// kernel: ann_regressor_forward.1
$region0: #{ann_regressor_forward.1}
  #allocation0 [shape = 'u32[]', space=smem, size = 0x4, offset = 0x4, fixed_abs, tag = 'smem constant byte address 0x4 - core index']
  #allocation1 [shape = 'u32[72,128]{1,0:T(1,128)}', space=vmem, size = 0x9000, scoped, tag = 'internal scratch']
  #allocation2 [shape = 'f32[1]{0:T(128)S(6)}', space=smem, size = 0x200, scoped, tag = 'scoped memory for ann_regressor_forward.1']
  %s0 = inlined_call_operand.vmem [shape: f32[4,128], index: 0, kind: input, shape index: {}]
  %s1 = inlined_call_operand.vmem [shape: f32[32,4], index: 1, kind: input, shape index: {}]
  %s2 = inlined_call_operand.vmem [shape: f32[32,1], index: 2, kind: input, shape index: {}]
  %s3 = inlined_call_operand.vmem [shape: f32[32,32], index: 3, kind: input, shape index: {}]
  %s4 = inlined_call_operand.vmem [shape: f32[32,1], index: 4, kind: input, shape index: {}]
  %s5 = inlined_call_operand.vmem [shape: f32[32,1], index: 5, kind: input, shape index: {}]
  %s6 = inlined_call_operand.<no memory space> [shape: f32[1], index: 6, kind: input, shape index: {}]
  %s7 = inlined_call_operand.vmem [shape: f32[1,128], index: 7, kind: output, shape index: {}]
  %s8 = sld [smem:[#allocation0]]
  $region38: #{ann_regressor_forward.1} parent=0
    _
  %s10 = ssub.s32 1, %s8
  %s11 = scalar_select 0, %s10, %s8
  %12 = sst [smem:[#allocation2]] %s6
  // Predicated region
  $region2: #{ann_regressor_forward.1} parent=0 // pred_check
    _
  $region3: #{ann_regressor_forward.1} parent=0 // pred_check_branch
    %14 = sbr.rel (0) target = $region5
  $region4: #{ann_regressor_forward.1} parent=0 // pred_region
    _
  $region5: #{ann_regressor_forward.1} parent=0 // pred_fallthru
    _
  // Predicated region
  $region6: #{ann_regressor_forward.1} parent=0 // pred_check
    _
  $region7: #{ann_regressor_forward.1} parent=0 // pred_check_branch
    %16 = sbr.rel (0) target = $region9
  $region8: #{ann_regressor_forward.1} parent=0 // pred_region
    _
  $region9: #{ann_regressor_forward.1} parent=0 // pred_fallthru
    _
  // Predicated region
  $region10: #{ann_regressor_forward.1} parent=0 // pred_check
    _
  $region11: #{ann_regressor_forward.1} parent=0 // pred_check_branch
    %18 = sbr.rel (0) target = $region13
  $region12: #{ann_regressor_forward.1} parent=0 // pred_region
    _
  $region13: #{ann_regressor_forward.1} parent=0 // pred_fallthru
    _
  // Predicated region
  $region14: #{ann_regressor_forward.1} parent=0 // pred_check
    _
  $region15: #{ann_regressor_forward.1} parent=0 // pred_check_branch
    %20 = sbr.rel (0) target = $region17
  $region16: #{ann_regressor_forward.1} parent=0 // pred_region
    _
  $region17: #{ann_regressor_forward.1} parent=0 // pred_fallthru
    _
  // Predicated region
  $region18: #{ann_regressor_forward.1} parent=0 // pred_check
    _
  $region19: #{ann_regressor_forward.1} parent=0 // pred_check_branch
    %22 = sbr.rel (0) target = $region21
  $region20: #{ann_regressor_forward.1} parent=0 // pred_region
    _
  $region21: #{ann_regressor_forward.1} parent=0 // pred_fallthru
    _
  // Predicated region
  $region22: #{ann_regressor_forward.1} parent=0 // pred_check
    _
  $region23: #{ann_regressor_forward.1} parent=0 // pred_check_branch
    %24 = sbr.rel (0) target = $region25
  $region24: #{ann_regressor_forward.1} parent=0 // pred_region
    _
  $region25: #{ann_regressor_forward.1} parent=0 // pred_fallthru
    _
  // Predicated region
  $region26: #{ann_regressor_forward.1} parent=0 // pred_check
    _
  $region27: #{ann_regressor_forward.1} parent=0 // pred_check_branch
    %26 = sbr.rel (0) target = $region29
  $region28: #{ann_regressor_forward.1} parent=0 // pred_region
    _
  $region29: #{ann_regressor_forward.1} parent=0 // pred_fallthru
    _
  %v27 = vld [vmem:[%s0] sm:$0xf]
  %v28 = vld [vmem:[%s1] sm:$0xff]
  %v29 = vld [vmem:[%s1 + $0x8] sm:$0xff]
  %v30 = vld [vmem:[%s1 + $0x10] sm:$0xff]
  %v31 = vld [vmem:[%s1 + $0x18] sm:$0xff]
  %v32 = vld [vmem:[%s2] sm:$0xff]
  %v33 = vld [vmem:[%s2 + $0x8] sm:$0xff]
  %v34 = vld [vmem:[%s2 + $0x10] sm:$0xff]
  %v35 = vld [vmem:[%s2 + $0x18] sm:$0xff]
  %37 = vset.pattern.permute.xlu0 0
  %38 = vperm.xlu0 %37, %v32
  %v39 = vpop.permute.xlu0 %38
  %42 = vset.pattern.permute.xlu0 0
  %43 = vperm.xlu0 %42, %v33
  %v44 = vpop.permute.xlu0 %43
  %47 = vset.pattern.permute.xlu0 0
  %48 = vperm.xlu0 %47, %v34
  %v49 = vpop.permute.xlu0 %48
  %52 = vset.pattern.permute.xlu0 0
  %53 = vperm.xlu0 %52, %v35
  %v54 = vpop.permute.xlu0 %53
  %vm56 = vcmask 31744
  %v58 = vsel %vm56, %v28, 0
  %v61 = vsel %vm56, %v29, 0
  %v64 = vsel %vm56, %v30, 0
  %v67 = vsel %vm56, %v31, 0
  %vm69 = vcmask 1043456
  %v71 = vsel %vm69, %v27, 0
  %73 = vmatpush.msra.mxu0 0.0
  %74 = vmatpush.msra.mxu0 0.0
  %75 = vmatpush.msra.mxu0 0.0
  %76 = vmatpush.msra.mxu0 0.0
  %77 = vmatpush.msra.mxu0 0.0
  %78 = vmatpush.msra.mxu0 0.0
  %79 = vmatpush.msra.mxu0 0.0
  %80 = vmatpush.msra.mxu0 0.0
  %81 = vmatpush.msra.mxu0 0.0
  %82 = vmatpush.msra.mxu0 0.0
  %83 = vmatpush.msra.mxu0 0.0
  %84 = vmatpush.msra.mxu0 0.0
  %85 = vmatpush.msra.mxu0 0.0
  %86 = vmatpush.msra.mxu0 0.0
  %87 = vmatpush.msra.mxu0 0.0
  %88 = vmatpush.msra.mxu0 %v71
  %89 = vmatmul.f32.gmra.mxu0 %v58
  %v90 = vpop.f32.mrf.mxu0
  %v91 = vadd.f32 %v39, %v90
  %92 = vmatmul.f32.gmra.mxu0 %v61
  %v93 = vpop.f32.mrf.mxu0
  %v94 = vadd.f32 %v44, %v93
  %95 = vmatmul.f32.gmra.mxu0 %v64
  %v96 = vpop.f32.mrf.mxu0
  %v97 = vadd.f32 %v49, %v96
  %98 = vmatmul.f32.gmra.mxu0 %v67
  %v99 = vpop.f32.mrf.mxu0
  %v100 = vadd.f32 %v54, %v99
  %101 = vdwg.mxu0
  %v102 = vxor.u32 %v91, 2147483648
  %v103 = vxor.u32 %v94, 2147483648
  %v104 = vxor.u32 %v97, 2147483648
  %v105 = vxor.u32 %v100, 2147483648
  %v106 = vmul.f32 %v102, 1.442695
  %v107 = vpow.pop %v106
  %v108 = vmul.f32 %v103, 1.442695
  %v109 = vpow.pop %v108
  %v110 = vmul.f32 %v104, 1.442695
  %v111 = vpow.pop %v110
  %v112 = vmul.f32 %v105, 1.442695
  %v113 = vpow.pop %v112
  %v114 = vadd.f32 %v107, 1.0
  %v115 = vadd.f32 %v109, 1.0
  %v116 = vadd.f32 %v111, 1.0
  %v117 = vadd.f32 %v113, 1.0
  %v118 = vrcp.pop %v114
  %v119 = vmul.f32 %v114, %v118
  %v120 = vsub.f32 1.0, %v119
  %v121 = vmul.f32 %v118, %v120
  %v122 = vadd.f32 %v118, %v121
  %vm123 = vweird.f32 %v114
  %vm124 = vweird.f32 %v118
  %vm125 = vmor %vm123, %vm124
  %v126 = vsel %vm125, %v118, %v122
  %v127 = vand.u32 2147483647, %v114
  %vm128 = vcmp.eq.f32.partialorder %v127, 8.507059e+37
  %v129 = vand.u32 %v114, 2147483648
  %v130 = vor.u32 1.1754944e-38, %v129
  %v131 = vsel %vm128, %v130, %v126
  %v132 = vmul.f32 1.0, %v131
  %v133 = vrcp.pop %v115
  %v134 = vmul.f32 %v115, %v133
  %v135 = vsub.f32 1.0, %v134
  %v136 = vmul.f32 %v133, %v135
  %v137 = vadd.f32 %v133, %v136
  %vm138 = vweird.f32 %v115
  %vm139 = vweird.f32 %v133
  %vm140 = vmor %vm138, %vm139
  %v141 = vsel %vm140, %v133, %v137
  %v142 = vand.u32 2147483647, %v115
  %vm143 = vcmp.eq.f32.partialorder %v142, 8.507059e+37
  %v144 = vand.u32 %v115, 2147483648
  %v145 = vor.u32 1.1754944e-38, %v144
  %v146 = vsel %vm143, %v145, %v141
  %v147 = vmul.f32 1.0, %v146
  %v148 = vrcp.pop %v116
  %v149 = vmul.f32 %v116, %v148
  %v150 = vsub.f32 1.0, %v149
  %v151 = vmul.f32 %v148, %v150
  %v152 = vadd.f32 %v148, %v151
  %vm153 = vweird.f32 %v116
  %vm154 = vweird.f32 %v148
  %vm155 = vmor %vm153, %vm154
  %v156 = vsel %vm155, %v148, %v152
  %v157 = vand.u32 2147483647, %v116
  %vm158 = vcmp.eq.f32.partialorder %v157, 8.507059e+37
  %v159 = vand.u32 %v116, 2147483648
  %v160 = vor.u32 1.1754944e-38, %v159
  %v161 = vsel %vm158, %v160, %v156
  %v162 = vmul.f32 1.0, %v161
  %v163 = vrcp.pop %v117
  %v164 = vmul.f32 %v117, %v163
  %v165 = vsub.f32 1.0, %v164
  %v166 = vmul.f32 %v163, %v165
  %v167 = vadd.f32 %v163, %v166
  %vm168 = vweird.f32 %v117
  %vm169 = vweird.f32 %v163
  %vm170 = vmor %vm168, %vm169
  %v171 = vsel %vm170, %v163, %v167
  %v172 = vand.u32 2147483647, %v117
  %vm173 = vcmp.eq.f32.partialorder %v172, 8.507059e+37
  %v174 = vand.u32 %v117, 2147483648
  %v175 = vor.u32 1.1754944e-38, %v174
  %v176 = vsel %vm173, %v175, %v171
  %v177 = vmul.f32 1.0, %v176
  %v178 = vld [vmem:[%s3] sm:$0xff]
  %v179 = vld [vmem:[%s3 + $0x8] sm:$0xff]
  %v180 = vld [vmem:[%s3 + $0x10] sm:$0xff]
  %v181 = vld [vmem:[%s3 + $0x18] sm:$0xff]
  %v182 = vld [vmem:[%s4] sm:$0xff]
  %v183 = vld [vmem:[%s4 + $0x8] sm:$0xff]
  %v184 = vld [vmem:[%s4 + $0x10] sm:$0xff]
  %v185 = vld [vmem:[%s4 + $0x18] sm:$0xff]
  %187 = vset.pattern.permute.xlu0 0
  %188 = vperm.xlu0 %187, %v182
  %v189 = vpop.permute.xlu0 %188
  %192 = vset.pattern.permute.xlu0 0
  %193 = vperm.xlu0 %192, %v183
  %v194 = vpop.permute.xlu0 %193
  %197 = vset.pattern.permute.xlu0 0
  %198 = vperm.xlu0 %197, %v184
  %v199 = vpop.permute.xlu0 %198
  %202 = vset.pattern.permute.xlu0 0
  %203 = vperm.xlu0 %202, %v185
  %v204 = vpop.permute.xlu0 %203
  %vm206 = vcmask 261120
  %v208 = vsel %vm206, %v178, 0
  %v211 = vsel %vm206, %v179, 0
  %v214 = vsel %vm206, %v180, 0
  %v217 = vsel %vm206, %v181, 0
  %219 = vmatpush.msra.mxu0 0.0
  %220 = vmatpush.msra.mxu0 0.0
  %221 = vmatpush.msra.mxu0 0.0
  %222 = vmatpush.msra.mxu0 0.0
  %223 = vmatpush.msra.mxu0 0.0
  %224 = vmatpush.msra.mxu0 0.0
  %225 = vmatpush.msra.mxu0 0.0
  %226 = vmatpush.msra.mxu0 0.0
  %227 = vmatpush.msra.mxu0 0.0
  %228 = vmatpush.msra.mxu0 0.0
  %229 = vmatpush.msra.mxu0 0.0
  %230 = vmatpush.msra.mxu0 0.0
  %231 = vmatpush.msra.mxu0 %v177
  %232 = vmatpush.msra.mxu0 %v162
  %233 = vmatpush.msra.mxu0 %v147
  %234 = vmatpush.msra.mxu0 %v132
  %235 = vmatmul.f32.gmra.mxu0 %v208
  %v236 = vpop.f32.mrf.mxu0
  %v237 = vadd.f32 %v189, %v236
  %238 = vmatmul.f32.gmra.mxu0 %v211
  %v239 = vpop.f32.mrf.mxu0
  %v240 = vadd.f32 %v194, %v239
  %241 = vmatmul.f32.gmra.mxu0 %v214
  %v242 = vpop.f32.mrf.mxu0
  %v243 = vadd.f32 %v199, %v242
  %244 = vmatmul.f32.gmra.mxu0 %v217
  %v245 = vpop.f32.mrf.mxu0
  %v246 = vadd.f32 %v204, %v245
  %247 = vdwg.mxu0
  %v248 = vxor.u32 %v237, 2147483648
  %v249 = vxor.u32 %v240, 2147483648
  %v250 = vxor.u32 %v243, 2147483648
  %v251 = vxor.u32 %v246, 2147483648
  %v252 = vmul.f32 %v248, 1.442695
  %v253 = vpow.pop %v252
  %v254 = vmul.f32 %v249, 1.442695
  %v255 = vpow.pop %v254
  %v256 = vmul.f32 %v250, 1.442695
  %v257 = vpow.pop %v256
  %v258 = vmul.f32 %v251, 1.442695
  %v259 = vpow.pop %v258
  %v260 = vadd.f32 %v253, 1.0
  %v261 = vadd.f32 %v255, 1.0
  %v262 = vadd.f32 %v257, 1.0
  %v263 = vadd.f32 %v259, 1.0
  %v264 = vrcp.pop %v260
  %v265 = vmul.f32 %v260, %v264
  %v266 = vsub.f32 1.0, %v265
  %v267 = vmul.f32 %v264, %v266
  %v268 = vadd.f32 %v264, %v267
  %vm269 = vweird.f32 %v260
  %vm270 = vweird.f32 %v264
  %vm271 = vmor %vm269, %vm270
  %v272 = vsel %vm271, %v264, %v268
  %v273 = vand.u32 2147483647, %v260
  %vm274 = vcmp.eq.f32.partialorder %v273, 8.507059e+37
  %v275 = vand.u32 %v260, 2147483648
  %v276 = vor.u32 1.1754944e-38, %v275
  %v277 = vsel %vm274, %v276, %v272
  %v278 = vmul.f32 1.0, %v277
  %v279 = vrcp.pop %v261
  %v280 = vmul.f32 %v261, %v279
  %v281 = vsub.f32 1.0, %v280
  %v282 = vmul.f32 %v279, %v281
  %v283 = vadd.f32 %v279, %v282
  %vm284 = vweird.f32 %v261
  %vm285 = vweird.f32 %v279
  %vm286 = vmor %vm284, %vm285
  %v287 = vsel %vm286, %v279, %v283
  %v288 = vand.u32 2147483647, %v261
  %vm289 = vcmp.eq.f32.partialorder %v288, 8.507059e+37
  %v290 = vand.u32 %v261, 2147483648
  %v291 = vor.u32 1.1754944e-38, %v290
  %v292 = vsel %vm289, %v291, %v287
  %v293 = vmul.f32 1.0, %v292
  %v294 = vrcp.pop %v262
  %v295 = vmul.f32 %v262, %v294
  %v296 = vsub.f32 1.0, %v295
  %v297 = vmul.f32 %v294, %v296
  %v298 = vadd.f32 %v294, %v297
  %vm299 = vweird.f32 %v262
  %vm300 = vweird.f32 %v294
  %vm301 = vmor %vm299, %vm300
  %v302 = vsel %vm301, %v294, %v298
  %v303 = vand.u32 2147483647, %v262
  %vm304 = vcmp.eq.f32.partialorder %v303, 8.507059e+37
  %v305 = vand.u32 %v262, 2147483648
  %v306 = vor.u32 1.1754944e-38, %v305
  %v307 = vsel %vm304, %v306, %v302
  %v308 = vmul.f32 1.0, %v307
  %v309 = vrcp.pop %v263
  %v310 = vmul.f32 %v263, %v309
  %v311 = vsub.f32 1.0, %v310
  %v312 = vmul.f32 %v309, %v311
  %v313 = vadd.f32 %v309, %v312
  %vm314 = vweird.f32 %v263
  %vm315 = vweird.f32 %v309
  %vm316 = vmor %vm314, %vm315
  %v317 = vsel %vm316, %v309, %v313
  %v318 = vand.u32 2147483647, %v263
  %vm319 = vcmp.eq.f32.partialorder %v318, 8.507059e+37
  %v320 = vand.u32 %v263, 2147483648
  %v321 = vor.u32 1.1754944e-38, %v320
  %v322 = vsel %vm319, %v321, %v317
  %v323 = vmul.f32 1.0, %v322
  %v324 = vld [vmem:[%s5] sm:$0xff]
  %v325 = vld [vmem:[%s5 + $0x8] sm:$0xff]
  %v326 = vld [vmem:[%s5 + $0x10] sm:$0xff]
  %v327 = vld [vmem:[%s5 + $0x18] sm:$0xff]
  %329 = vset.pattern.permute.xlu0 0
  %330 = vperm.xlu0 %329, %v324
  %v331 = vpop.permute.xlu0 %330
  %334 = vset.pattern.permute.xlu0 0
  %335 = vperm.xlu0 %334, %v325
  %v336 = vpop.permute.xlu0 %335
  %339 = vset.pattern.permute.xlu0 0
  %340 = vperm.xlu0 %339, %v326
  %v341 = vpop.permute.xlu0 %340
  %344 = vset.pattern.permute.xlu0 0
  %345 = vperm.xlu0 %344, %v327
  %v346 = vpop.permute.xlu0 %345
  %v348 = vmul.f32 %v331, %v278
  %v349 = vmul.f32 %v336, %v293
  %v350 = vmul.f32 %v341, %v308
  %v351 = vmul.f32 %v346, %v323
  %v352 = vadd.f32 %v348, %v349
  %v353 = vadd.f32 %v352, %v350
  %v354 = vadd.f32 %v353, %v351
  %v355 = vrot.slane %v354, 4
  %v356 = vadd.f32 %v354, %v355
  %v357 = vrot.slane %v356, 2
  %v358 = vadd.f32 %v356, %v357
  %v359 = vrot.slane %v358, 1
  %v360 = vadd.f32 %v358, %v359
  %s361 = sld [smem:[#allocation2]]
  %v362 = vstv %s361
  %v363 = vadd.f32 %v360, %v362
  %364 = vst [vmem:[%s7] sm:$0x1] %v363
  // Predicated region
  $region30: #{ann_regressor_forward.1} parent=0 // pred_check
    _
  $region31: #{ann_regressor_forward.1} parent=0 // pred_check_branch
    %366 = sbr.rel (0) target = $region33
  $region32: #{ann_regressor_forward.1} parent=0 // pred_region
    _
  $region33: #{ann_regressor_forward.1} parent=0 // pred_fallthru
    _
  // Predicated region
  $region34: #{ann_regressor_forward.1} parent=0 // pred_check
    _
  $region35: #{ann_regressor_forward.1} parent=0 // pred_check_branch
    %368 = sbr.rel (0) target = $region37
  $region36: #{ann_regressor_forward.1} parent=0 // pred_region
    _
  $region37: #{ann_regressor_forward.1} parent=0 // pred_fallthru
    _

</llo_original>
